<compile_context>
chip_gen: v6e
topology: v6e:2x2x1
jax: 0.10.0
libtpu: 0.0.40
codegen_flags: <defaults>
</compile_context>

<pallas_src>
import jax
import jax.numpy as jnp
from jax.experimental import pallas as pl
from jax.experimental.pallas import tpu as pltpu


def _conv_embed_ln_kernel(p_ref, w_ref, prm_ref, o_ref):
    # p_ref:   (TM, K)  im2col patches for TM output positions (native dtype)
    # w_ref:   (K, E)   reshaped conv weight (native dtype, resident)
    # prm_ref: (3, E)   packed [bias; gamma; beta] in f32 (resident)
    # o_ref:   (TM, E)  normalized embeddings
    y = jnp.dot(p_ref[...], w_ref[...], preferred_element_type=jnp.float32)
    prm = prm_ref[...]                      # (3, E) f32
    y = y + prm[0:1, :]                     # conv bias
    # LayerNorm over embed_dim (biased variance, eps=1e-5: nn.LayerNorm default)
    mean = jnp.mean(y, axis=-1, keepdims=True)
    diff = y - mean
    var = jnp.mean(diff * diff, axis=-1, keepdims=True)
    y_hat = diff * jax.lax.rsqrt(var + 1e-5)
    o_ref[...] = (y_hat * prm[1:2, :] + prm[2:3, :]).astype(o_ref.dtype)


def conv_embedd_forward(x, weight, bias, gamma, beta, *, stride, padding):
    """x: (B, C, H, W) NCHW.  weight: (E, C, kh, kw).  Returns ((B, Ho*Wo, E), Ho, Wo)."""
    B, C, H, W = x.shape
    E, _, kh, kw = weight.shape
    H_out = (H + 2 * padding - kh) // stride + 1
    W_out = (W + 2 * padding - kw) // stride + 1
    K = C * kh * kw
    M = B * H_out * W_out

    # ---- glue: patch extraction as ONE fused XLA op, already in (B,Ho,Wo,K)
    # layout with K ordered (c, i, j) -- the same order as weight.reshape(E, K).
    # Precision.HIGHEST keeps the identity-kernel extraction bit-exact for f32.
    patches = jax.lax.conv_general_dilated_patches(
        x,
        filter_shape=(kh, kw),
        window_strides=(stride, stride),
        padding=[(padding, padding), (padding, padding)],
        dimension_numbers=("NCHW", "OIHW", "NHWC"),
        precision=jax.lax.Precision.HIGHEST,
    ).reshape(M, K)

    w2d = weight.reshape(E, K).T                                  # (K, E)
    params = jnp.stack([bias, gamma, beta], axis=0).astype(jnp.float32)  # (3, E)

    TM = min(512, M)                 # big tile: ~85% of HBM roofline vs ~29% at 64/128
    grid_m = pl.cdiv(M, TM)          # ragged tail handled by Pallas boundary masking

    itemsize = jnp.dtype(x.dtype).itemsize
    cost = pl.CostEstimate(
        flops=2 * M * K * E,
        transcendentals=M,  # one rsqrt per output row
        bytes_accessed=(M * K + K * E + M * E) * itemsize + 3 * E * 4,
    )

    out = pl.pallas_call(
        _conv_embed_ln_kernel,
        out_shape=jax.ShapeDtypeStruct((M, E), x.dtype),
        grid_spec=pltpu.PrefetchScalarGridSpec(
            num_scalar_prefetch=0,
            grid=(grid_m,),
            in_specs=[
                pl.BlockSpec((TM, K), lambda i: (i, 0)),   # streamed patch tiles
                pl.BlockSpec((K, E), lambda i: (0, 0)),    # weight stays resident
                pl.BlockSpec((3, E), lambda i: (0, 0)),    # packed bias/gamma/beta
            ],
            out_specs=pl.BlockSpec((TM, E), lambda i: (i, 0)),
        ),
        compiler_params=pltpu.CompilerParams(
            dimension_semantics=("parallel",),
        ),
        cost_estimate=cost,
    )(patches, w2d, params)

    return out.reshape(B, H_out * W_out, E), H_out, W_out


def _reference(x, weight, bias, gamma, beta, *, stride, padding):
    y = jax.lax.conv_general_dilated(
        x, weight, window_strides=(stride, stride),
        padding=[(padding, padding), (padding, padding)],
        dimension_numbers=("NCHW", "OIHW", "NCHW"),
    ) + bias.reshape(1, -1, 1, 1)
    B, E, Ho, Wo = y.shape
    y = y.transpose(0, 2, 3, 1).reshape(B, Ho * Wo, E)
    mean = jnp.mean(y, axis=-1, keepdims=True)
    var = jnp.mean((y - mean) ** 2, axis=-1, keepdims=True)
    return (y - mean) / jnp.sqrt(var + 1e-5) * gamma + beta, Ho, Wo


if __name__ == "__main__":
    # Small shapes consistent with the module's forward.
    B, C, H, W = 2, 4, 16, 16
    embed_dim, patch_size, stride, padding = 32, 3, 2, 1

    key = jax.random.PRNGKey(0)
    kx, kw, kb = jax.random.split(key, 3)
    x = jax.random.normal(kx, (B, C, H, W), dtype=jnp.float32)
    weight = 0.1 * jax.random.normal(kw, (embed_dim, C, patch_size, patch_size), jnp.float32)
    bias = 0.01 * jax.random.normal(kb, (embed_dim,), jnp.float32)
    gamma = jnp.ones((embed_dim,), jnp.float32)   # nn.LayerNorm default init
    beta = jnp.zeros((embed_dim,), jnp.float32)

    out, H_out, W_out = conv_embedd_forward(
        x, weight, bias, gamma, beta, stride=stride, padding=padding
    )
    out = jax.block_until_ready(out)

    ref, Ho_ref, Wo_ref = _reference(
        x, weight, bias, gamma, beta, stride=stride, padding=padding
    )
    assert out.shape == (B, H_out * W_out, embed_dim)
    assert (H_out, W_out) == (Ho_ref, Wo_ref)
    assert jnp.allclose(out, ref, atol=1e-4, rtol=1e-4)
    print("KERNEL_OK")
</pallas_src>

<mosaic_0001>
module attributes {stable_mosaic.version = 11 : i64} {
  func.func @_conv_embed_ln_kernel(%arg0: i32, %arg1: memref<128x36xf32, #tpu.memory_space<vmem>>, %arg2: memref<36x32xf32, #tpu.memory_space<vmem>>, %arg3: memref<3x32xf32, #tpu.memory_space<vmem>>, %arg4: memref<128x32xf32, #tpu.memory_space<vmem>>) attributes {dimension_semantics = [#tpu.dimension_semantics<parallel>], iteration_bounds = array<i64: 1>, scalar_prefetch = 0 : i64, scratch_operands = 0 : i64, tpu.core_type = #tpu.core_type<tc>, window_params = [{transform_indices = @transform_0, window_bounds = array<i64: 128, 36>}, {pipeline_mode = #tpu.pipeline_mode<synchronous>, transform_indices = @transform_1, window_bounds = array<i64: 36, 32>}, {pipeline_mode = #tpu.pipeline_mode<synchronous>, transform_indices = @transform_2, window_bounds = array<i64: 3, 32>}, {transform_indices = @transform_3, window_bounds = array<i64: 128, 32>}]} {
    %c0 = arith.constant 0 : index
    %c0_0 = arith.constant 0 : index
    %0 = vector.load %arg1[%c0, %c0_0] : memref<128x36xf32, #tpu.memory_space<vmem>>, vector<128x36xf32>
    %c0_1 = arith.constant 0 : index
    %c0_2 = arith.constant 0 : index
    %1 = vector.load %arg2[%c0_1, %c0_2] : memref<36x32xf32, #tpu.memory_space<vmem>>, vector<36x32xf32>
    %cst = arith.constant dense<0.000000e+00> : vector<128x32xf32>
    %2 = tpu.matmul %0, %1, %cst {dimension_numbers = #tpu.dot_dimension_numbers<[1], [0], [0], [1], [0, 0, 1, 1], [], []>} : vector<128x36xf32>, vector<36x32xf32>, vector<128x32xf32> -> vector<128x32xf32>
    %c0_3 = arith.constant 0 : index
    %c0_4 = arith.constant 0 : index
    %3 = vector.load %arg3[%c0_3, %c0_4] : memref<3x32xf32, #tpu.memory_space<vmem>>, vector<3x32xf32>
    %4 = vector.extract_strided_slice %3 {offsets = [0, 0], sizes = [1, 32], strides = [1, 1]} : vector<3x32xf32> to vector<1x32xf32>
    %5 = vector.broadcast %4 : vector<1x32xf32> to vector<128x32xf32>
    %6 = arith.addf %2, %5 : vector<128x32xf32>
    %cst_5 = arith.constant dense<0.000000e+00> : vector<128xf32>
    %7 = vector.multi_reduction <add>, %6, %cst_5 [1] : vector<128x32xf32> to vector<128xf32>
    %8 = vector.shape_cast %7 : vector<128xf32> to vector<128x1xf32>
    %cst_6 = arith.constant 3.200000e+01 : f32
    %9 = vector.broadcast %cst_6 : f32 to vector<128x1xf32>
    %10 = arith.divf %8, %9 : vector<128x1xf32>
    %11 = vector.broadcast %10 : vector<128x1xf32> to vector<128x32xf32>
    %12 = arith.subf %6, %11 : vector<128x32xf32>
    %13 = arith.mulf %12, %12 : vector<128x32xf32>
    %cst_7 = arith.constant dense<0.000000e+00> : vector<128xf32>
    %14 = vector.multi_reduction <add>, %13, %cst_7 [1] : vector<128x32xf32> to vector<128xf32>
    %15 = vector.shape_cast %14 : vector<128xf32> to vector<128x1xf32>
    %cst_8 = arith.constant 3.200000e+01 : f32
    %16 = vector.broadcast %cst_8 : f32 to vector<128x1xf32>
    %17 = arith.divf %15, %16 : vector<128x1xf32>
    %cst_9 = arith.constant 9.99999974E-6 : f32
    %18 = vector.broadcast %cst_9 : f32 to vector<128x1xf32>
    %19 = arith.addf %17, %18 : vector<128x1xf32>
    %20 = math.rsqrt %19 : vector<128x1xf32>
    %21 = vector.broadcast %20 : vector<128x1xf32> to vector<128x32xf32>
    %22 = arith.mulf %12, %21 : vector<128x32xf32>
    %23 = vector.extract_strided_slice %3 {offsets = [1, 0], sizes = [1, 32], strides = [1, 1]} : vector<3x32xf32> to vector<1x32xf32>
    %24 = vector.broadcast %23 : vector<1x32xf32> to vector<128x32xf32>
    %25 = arith.mulf %22, %24 : vector<128x32xf32>
    %26 = vector.extract_strided_slice %3 {offsets = [2, 0], sizes = [1, 32], strides = [1, 1]} : vector<3x32xf32> to vector<1x32xf32>
    %27 = vector.broadcast %26 : vector<1x32xf32> to vector<128x32xf32>
    %28 = arith.addf %25, %27 : vector<128x32xf32>
    %c0_10 = arith.constant 0 : index
    %c0_11 = arith.constant 0 : index
    %29 = vector.load %arg4[%c0_10, %c0_11] : memref<128x32xf32, #tpu.memory_space<vmem>>, vector<128x32xf32>
    tpu.vector_store %arg4[%c0_10, %c0_11], %28 {strides = array<i32>} : memref<128x32xf32, #tpu.memory_space<vmem>>, vector<128x32xf32>,
    return
  }
  func.func @transform_0(%arg0: i32) -> (i32, i32) {
    %c0_i32 = arith.constant 0 : i32
    %c0_i32_0 = arith.constant 0 : i32
    return %arg0, %c0_i32 : i32, i32
  }
  func.func @transform_1(%arg0: i32) -> (i32, i32) {
    %c0_i32 = arith.constant 0 : i32
    %c0_i32_0 = arith.constant 0 : i32
    %c0_i32_1 = arith.constant 0 : i32
    return %c0_i32, %c0_i32_0 : i32, i32
  }
  func.func @transform_2(%arg0: i32) -> (i32, i32) {
    %c0_i32 = arith.constant 0 : i32
    %c0_i32_0 = arith.constant 0 : i32
    %c0_i32_1 = arith.constant 0 : i32
    return %c0_i32, %c0_i32_0 : i32, i32
  }
  func.func @transform_3(%arg0: i32) -> (i32, i32) {
    %c0_i32 = arith.constant 0 : i32
    %c0_i32_0 = arith.constant 0 : i32
    return %arg0, %c0_i32 : i32, i32
  }
}

</mosaic_0001>

<llo_original>
// kernel: tpu_custom_call.1
$region0: #{tpu_custom_call.1}
  #allocation0 [shape = 'u32[]', space=smem, size = 0x4, offset = 0x4, fixed_abs, tag = 'smem constant byte address 0x4 - core index']
  #allocation1 [shape = 'u32[144,128]{1,0:T(1,128)}', space=vmem, size = 0x12000, scoped, tag = 'internal scratch']
  %s0 = inlined_call_operand.vmem [shape: f32[128,36], index: 0, kind: input, shape index: {}]
  %s1 = inlined_call_operand.vmem [shape: f32[36,32], index: 1, kind: input, shape index: {}]
  %s2 = inlined_call_operand.vmem [shape: f32[3,32], index: 2, kind: input, shape index: {}]
  %s3 = inlined_call_operand.vmem [shape: f32[128,32], index: 3, kind: output, shape index: {}]
  %s4 = sld [smem:[#allocation0]]
  $region22: #{tpu_custom_call.1} parent=0
    _
  %s6 = ssub.s32 1, %s4
  %s7 = scalar_select 0, %s6, %s4
  // Predicated region
  $region2: #{tpu_custom_call.1} parent=0 // pred_check
    _
  $region3: #{tpu_custom_call.1} parent=0 // pred_check_branch
    %9 = sbr.rel (0) target = $region5
  $region4: #{tpu_custom_call.1} parent=0 // pred_region
    _
  $region5: #{tpu_custom_call.1} parent=0 // pred_fallthru
    _
  // Predicated region
  $region6: #{tpu_custom_call.1} parent=0 // pred_check
    _
  $region7: #{tpu_custom_call.1} parent=0 // pred_check_branch
    %11 = sbr.rel (0) target = $region9
  $region8: #{tpu_custom_call.1} parent=0 // pred_region
    _
  $region9: #{tpu_custom_call.1} parent=0 // pred_fallthru
    _
  // Predicated region
  $region10: #{tpu_custom_call.1} parent=0 // pred_check
    _
  $region11: #{tpu_custom_call.1} parent=0 // pred_check_branch
    %13 = sbr.rel (0) target = $region13
  $region12: #{tpu_custom_call.1} parent=0 // pred_region
    _
  $region13: #{tpu_custom_call.1} parent=0 // pred_fallthru
    _
  %v14 = vld [vmem:[%s0] sm:$0xff]
  %v15 = vld [vmem:[%s0 + $0x8] sm:$0xff]
  %v16 = vld [vmem:[%s0 + $0x10] sm:$0xff]
  %v17 = vld [vmem:[%s0 + $0x18] sm:$0xff]
  %v18 = vld [vmem:[%s0 + $0x20] sm:$0xff]
  %v19 = vld [vmem:[%s0 + $0x28] sm:$0xff]
  %v20 = vld [vmem:[%s0 + $0x30] sm:$0xff]
  %v21 = vld [vmem:[%s0 + $0x38] sm:$0xff]
  %v22 = vld [vmem:[%s0 + $0x40] sm:$0xff]
  %v23 = vld [vmem:[%s0 + $0x48] sm:$0xff]
  %v24 = vld [vmem:[%s0 + $0x50] sm:$0xff]
  %v25 = vld [vmem:[%s0 + $0x58] sm:$0xff]
  %v26 = vld [vmem:[%s0 + $0x60] sm:$0xff]
  %v27 = vld [vmem:[%s0 + $0x68] sm:$0xff]
  %v28 = vld [vmem:[%s0 + $0x70] sm:$0xff]
  %v29 = vld [vmem:[%s0 + $0x78] sm:$0xff]
  %v30 = vld [vmem:[%s1] sm:$0xff]
  %v31 = vld [vmem:[%s1 + $0x8] sm:$0xff]
  %v32 = vld [vmem:[%s1 + $0x10] sm:$0xff]
  %v33 = vld [vmem:[%s1 + $0x18] sm:$0xff]
  %v34 = vld [vmem:[%s1 + $0x20] sm:$0xf]
  %v35 = vld [vmem:[%s2] sm:$0x7]
  %v36 = vlaneseq
  %v37 = vshrl.u32 %v36, 7
  %v38 = vsub.s32 0, %v37
  %v39 = vrot.slane %v35, %v38
  %vm40 = vcmask 293888
  %v42 = vsel %vm40, %v14, 0
  %v45 = vsel %vm40, %v15, 0
  %v48 = vsel %vm40, %v16, 0
  %v51 = vsel %vm40, %v17, 0
  %v54 = vsel %vm40, %v18, 0
  %v57 = vsel %vm40, %v19, 0
  %v60 = vsel %vm40, %v20, 0
  %v63 = vsel %vm40, %v21, 0
  %v66 = vsel %vm40, %v22, 0
  %v69 = vsel %vm40, %v23, 0
  %v72 = vsel %vm40, %v24, 0
  %v75 = vsel %vm40, %v25, 0
  %v78 = vsel %vm40, %v26, 0
  %v81 = vsel %vm40, %v27, 0
  %v84 = vsel %vm40, %v28, 0
  %v87 = vsel %vm40, %v29, 0
  %vm89 = vcmask 1043456
  %v91 = vsel %vm89, %v34, 0
  %93 = vmatprep.subr.mxu0 0.0
  %94 = vmatpush1.msra.mxu0 0.0
  %95 = vmatprep.subr.mxu0 0.0
  %96 = vmatpush1.msra.mxu0 0.0
  %97 = vmatprep.subr.mxu0 0.0
  %98 = vmatpush1.msra.mxu0 0.0
  %99 = vmatprep.subr.mxu0 0.0
  %100 = vmatpush1.msra.mxu0 0.0
  %101 = vmatprep.subr.mxu0 0.0
  %102 = vmatpush1.msra.mxu0 0.0
  %103 = vmatprep.subr.mxu0 0.0
  %104 = vmatpush1.msra.mxu0 0.0
  %105 = vmatprep.subr.mxu0 0.0
  %106 = vmatpush1.msra.mxu0 0.0
  %107 = vmatprep.subr.mxu0 0.0
  %108 = vmatpush1.msra.mxu0 0.0
  %109 = vmatprep.subr.mxu0 0.0
  %110 = vmatpush1.msra.mxu0 0.0
  %111 = vmatprep.subr.mxu0 0.0
  %112 = vmatpush1.msra.mxu0 0.0
  %113 = vmatprep.subr.mxu0 0.0
  %114 = vmatpush1.msra.mxu0 0.0
  %115 = vmatprep.subr.mxu0 0.0
  %116 = vmatpush1.msra.mxu0 %v91
  %117 = vmatprep.subr.mxu0 0.0
  %118 = vmatpush1.msra.mxu0 %v33
  %119 = vmatprep.subr.mxu0 0.0
  %120 = vmatpush1.msra.mxu0 %v32
  %121 = vmatprep.subr.mxu0 0.0
  %122 = vmatpush1.msra.mxu0 %v31
  %123 = vmatprep.subr.mxu0 0.0
  %124 = vmatpush1.msra.mxu0 %v30
  %125 = vmatprep.subr.mxu0 0.0
  %126 = vmatpush2.msra.mxu0 0.0
  %127 = vmatprep.subr.mxu0 0.0
  %128 = vmatpush2.msra.mxu0 0.0
  %129 = vmatprep.subr.mxu0 0.0
  %130 = vmatpush2.msra.mxu0 0.0
  %131 = vmatprep.subr.mxu0 0.0
  %132 = vmatpush2.msra.mxu0 0.0
  %133 = vmatprep.subr.mxu0 0.0
  %134 = vmatpush2.msra.mxu0 0.0
  %135 = vmatprep.subr.mxu0 0.0
  %136 = vmatpush2.msra.mxu0 0.0
  %137 = vmatprep.subr.mxu0 0.0
  %138 = vmatpush2.msra.mxu0 0.0
  %139 = vmatprep.subr.mxu0 0.0
  %140 = vmatpush2.msra.mxu0 0.0
  %141 = vmatprep.subr.mxu0 0.0
  %142 = vmatpush2.msra.mxu0 0.0
  %143 = vmatprep.subr.mxu0 0.0
  %144 = vmatpush2.msra.mxu0 0.0
  %145 = vmatprep.subr.mxu0 0.0
  %146 = vmatpush2.msra.mxu0 0.0
  %147 = vmatprep.subr.mxu0 0.0
  %148 = vmatpush2.msra.mxu0 0.0
  %149 = vmatprep.subr.mxu0 0.0
  %150 = vmatpush2.msra.mxu0 0.0
  %151 = vmatprep.subr.mxu0 0.0
  %152 = vmatpush2.msra.mxu0 0.0
  %153 = vmatprep.subr.mxu0 0.0
  %154 = vmatpush2.msra.mxu0 0.0
  %155 = vmatprep.subr.mxu0 0.0
  %156 = vmatpush2.msra.mxu0 0.0
  %157 = vmatprep.mubr.f32.mxu0 0.0
  %158 = vmatmul.mubr.f32.gmra.mxu0 %v42
  %v159 = vpop.f32.mrf.mxu0
  %v160 = vadd.f32 %v39, %v159
  %v161 = vpop.f32.mrf.mxu0
  %162 = vmatprep.mubr.f32.mxu0 0.0
  %163 = vmatmul.mubr.f32.gmra.mxu0 %v45
  %v164 = vpop.f32.mrf.mxu0
  %v165 = vadd.f32 %v39, %v164
  %v166 = vpop.f32.mrf.mxu0
  %167 = vmatprep.mubr.f32.mxu0 0.0
  %168 = vmatmul.mubr.f32.gmra.mxu0 %v48
  %v169 = vpop.f32.mrf.mxu0
  %v170 = vadd.f32 %v39, %v169
  %v171 = vpop.f32.mrf.mxu0
  %172 = vmatprep.mubr.f32.mxu0 0.0
  %173 = vmatmul.mubr.f32.gmra.mxu0 %v51
  %v174 = vpop.f32.mrf.mxu0
  %v175 = vadd.f32 %v39, %v174
  %v176 = vpop.f32.mrf.mxu0
  %177 = vmatprep.mubr.f32.mxu0 0.0
  %178 = vmatmul.mubr.f32.gmra.mxu0 %v54
  %v179 = vpop.f32.mrf.mxu0
  %v180 = vadd.f32 %v39, %v179
  %v181 = vpop.f32.mrf.mxu0
  %182 = vmatprep.mubr.f32.mxu0 0.0
  %183 = vmatmul.mubr.f32.gmra.mxu0 %v57
  %v184 = vpop.f32.mrf.mxu0
  %v185 = vadd.f32 %v39, %v184
  %v186 = vpop.f32.mrf.mxu0
  %187 = vmatprep.mubr.f32.mxu0 0.0
  %188 = vmatmul.mubr.f32.gmra.mxu0 %v60
  %v189 = vpop.f32.mrf.mxu0
  %v190 = vadd.f32 %v39, %v189
  %v191 = vpop.f32.mrf.mxu0
  %192 = vmatprep.mubr.f32.mxu0 0.0
  %193 = vmatmul.mubr.f32.gmra.mxu0 %v63
  %v194 = vpop.f32.mrf.mxu0
  %v195 = vadd.f32 %v39, %v194
  %v196 = vpop.f32.mrf.mxu0
  %197 = vmatprep.mubr.f32.mxu0 0.0
  %198 = vmatmul.mubr.f32.gmra.mxu0 %v66
  %v199 = vpop.f32.mrf.mxu0
  %v200 = vadd.f32 %v39, %v199
  %v201 = vpop.f32.mrf.mxu0
  %202 = vmatprep.mubr.f32.mxu0 0.0
  %203 = vmatmul.mubr.f32.gmra.mxu0 %v69
  %v204 = vpop.f32.mrf.mxu0
  %v205 = vadd.f32 %v39, %v204
  %v206 = vpop.f32.mrf.mxu0
  %207 = vmatprep.mubr.f32.mxu0 0.0
  %208 = vmatmul.mubr.f32.gmra.mxu0 %v72
  %v209 = vpop.f32.mrf.mxu0
  %v210 = vadd.f32 %v39, %v209
  %v211 = vpop.f32.mrf.mxu0
  %212 = vmatprep.mubr.f32.mxu0 0.0
  %213 = vmatmul.mubr.f32.gmra.mxu0 %v75
  %v214 = vpop.f32.mrf.mxu0
  %v215 = vadd.f32 %v39, %v214
  %v216 = vpop.f32.mrf.mxu0
  %217 = vmatprep.mubr.f32.mxu0 0.0
  %218 = vmatmul.mubr.f32.gmra.mxu0 %v78
  %v219 = vpop.f32.mrf.mxu0
  %v220 = vadd.f32 %v39, %v219
  %v221 = vpop.f32.mrf.mxu0
  %222 = vmatprep.mubr.f32.mxu0 0.0
  %223 = vmatmul.mubr.f32.gmra.mxu0 %v81
  %v224 = vpop.f32.mrf.mxu0
  %v225 = vadd.f32 %v39, %v224
  %v226 = vpop.f32.mrf.mxu0
  %227 = vmatprep.mubr.f32.mxu0 0.0
  %228 = vmatmul.mubr.f32.gmra.mxu0 %v84
  %v229 = vpop.f32.mrf.mxu0
  %v230 = vadd.f32 %v39, %v229
  %v231 = vpop.f32.mrf.mxu0
  %232 = vmatprep.mubr.f32.mxu0 0.0
  %233 = vmatmul.mubr.f32.gmra.mxu0 %v87
  %v234 = vpop.f32.mrf.mxu0
  %v235 = vadd.f32 %v39, %v234
  %v236 = vpop.f32.mrf.mxu0
  %237 = vdwg.mxu0
  %vm238 = vcmask 261120
  %v239 = vsel %vm238, %v160, 0.0
  %240 = vadd.xlane.f32.xlu0 %v239
  %v241 = vpop.xlane.xlu0 %240
  %v242 = vsel %vm238, %v165, 0.0
  %243 = vadd.xlane.f32.xlu0 %v242
  %v244 = vpop.xlane.xlu0 %243
  %v245 = vsel %vm238, %v170, 0.0
  %246 = vadd.xlane.f32.xlu0 %v245
  %v247 = vpop.xlane.xlu0 %246
  %v248 = vsel %vm238, %v175, 0.0
  %249 = vadd.xlane.f32.xlu0 %v248
  %v250 = vpop.xlane.xlu0 %249
  %v251 = vsel %vm238, %v180, 0.0
  %252 = vadd.xlane.f32.xlu0 %v251
  %v253 = vpop.xlane.xlu0 %252
  %v254 = vsel %vm238, %v185, 0.0
  %255 = vadd.xlane.f32.xlu0 %v254
  %v256 = vpop.xlane.xlu0 %255
  %v257 = vsel %vm238, %v190, 0.0
  %258 = vadd.xlane.f32.xlu0 %v257
  %v259 = vpop.xlane.xlu0 %258
  %v260 = vsel %vm238, %v195, 0.0
  %261 = vadd.xlane.f32.xlu0 %v260
  %v262 = vpop.xlane.xlu0 %261
  %v263 = vsel %vm238, %v200, 0.0
  %264 = vadd.xlane.f32.xlu0 %v263
  %v265 = vpop.xlane.xlu0 %264
  %v266 = vsel %vm238, %v205, 0.0
  %267 = vadd.xlane.f32.xlu0 %v266
  %v268 = vpop.xlane.xlu0 %267
  %v269 = vsel %vm238, %v210, 0.0
  %270 = vadd.xlane.f32.xlu0 %v269
  %v271 = vpop.xlane.xlu0 %270
  %v272 = vsel %vm238, %v215, 0.0
  %273 = vadd.xlane.f32.xlu0 %v272
  %v274 = vpop.xlane.xlu0 %273
  %v275 = vsel %vm238, %v220, 0.0
  %276 = vadd.xlane.f32.xlu0 %v275
  %v277 = vpop.xlane.xlu0 %276
  %v278 = vsel %vm238, %v225, 0.0
  %279 = vadd.xlane.f32.xlu0 %v278
  %v280 = vpop.xlane.xlu0 %279
  %v281 = vsel %vm238, %v230, 0.0
  %282 = vadd.xlane.f32.xlu0 %v281
  %v283 = vpop.xlane.xlu0 %282
  %v284 = vsel %vm238, %v235, 0.0
  %285 = vadd.xlane.f32.xlu0 %v284
  %v286 = vpop.xlane.xlu0 %285
  %v287 = vrcp.pop 32.0
  %v288 = vmul.f32 %v241, %v287
  %v289 = vmul.f32 %v244, %v287
  %v290 = vmul.f32 %v247, %v287
  %v291 = vmul.f32 %v250, %v287
  %v292 = vmul.f32 %v253, %v287
  %v293 = vmul.f32 %v256, %v287
  %v294 = vmul.f32 %v259, %v287
  %v295 = vmul.f32 %v262, %v287
  %v296 = vmul.f32 %v265, %v287
  %v297 = vmul.f32 %v268, %v287
  %v298 = vmul.f32 %v271, %v287
  %v299 = vmul.f32 %v274, %v287
  %v300 = vmul.f32 %v277, %v287
  %v301 = vmul.f32 %v280, %v287
  %v302 = vmul.f32 %v283, %v287
  %v303 = vmul.f32 %v286, %v287
  %v304 = vsub.f32 %v160, %v288
  %v305 = vsub.f32 %v165, %v289
  %v306 = vsub.f32 %v170, %v290
  %v307 = vsub.f32 %v175, %v291
  %v308 = vsub.f32 %v180, %v292
  %v309 = vsub.f32 %v185, %v293
  %v310 = vsub.f32 %v190, %v294
  %v311 = vsub.f32 %v195, %v295
  %v312 = vsub.f32 %v200, %v296
  %v313 = vsub.f32 %v205, %v297
  %v314 = vsub.f32 %v210, %v298
  %v315 = vsub.f32 %v215, %v299
  %v316 = vsub.f32 %v220, %v300
  %v317 = vsub.f32 %v225, %v301
  %v318 = vsub.f32 %v230, %v302
  %v319 = vsub.f32 %v235, %v303
  %v320 = vmul.f32 %v304, %v304
  %v321 = vmul.f32 %v305, %v305
  %v322 = vmul.f32 %v306, %v306
  %v323 = vmul.f32 %v307, %v307
  %v324 = vmul.f32 %v308, %v308
  %v325 = vmul.f32 %v309, %v309
  %v326 = vmul.f32 %v310, %v310
  %v327 = vmul.f32 %v311, %v311
  %v328 = vmul.f32 %v312, %v312
  %v329 = vmul.f32 %v313, %v313
  %v330 = vmul.f32 %v314, %v314
  %v331 = vmul.f32 %v315, %v315
  %v332 = vmul.f32 %v316, %v316
  %v333 = vmul.f32 %v317, %v317
  %v334 = vmul.f32 %v318, %v318
  %v335 = vmul.f32 %v319, %v319
  %v336 = vsel %vm238, %v320, 0.0
  %337 = vadd.xlane.f32.xlu0 %v336
  %v338 = vpop.xlane.xlu0 %337
  %v339 = vsel %vm238, %v321, 0.0
  %340 = vadd.xlane.f32.xlu0 %v339
  %v341 = vpop.xlane.xlu0 %340
  %v342 = vsel %vm238, %v322, 0.0
  %343 = vadd.xlane.f32.xlu0 %v342
  %v344 = vpop.xlane.xlu0 %343
  %v345 = vsel %vm238, %v323, 0.0
  %346 = vadd.xlane.f32.xlu0 %v345
  %v347 = vpop.xlane.xlu0 %346
  %v348 = vsel %vm238, %v324, 0.0
  %349 = vadd.xlane.f32.xlu0 %v348
  %v350 = vpop.xlane.xlu0 %349
  %v351 = vsel %vm238, %v325, 0.0
  %352 = vadd.xlane.f32.xlu0 %v351
  %v353 = vpop.xlane.xlu0 %352
  %v354 = vsel %vm238, %v326, 0.0
  %355 = vadd.xlane.f32.xlu0 %v354
  %v356 = vpop.xlane.xlu0 %355
  %v357 = vsel %vm238, %v327, 0.0
  %358 = vadd.xlane.f32.xlu0 %v357
  %v359 = vpop.xlane.xlu0 %358
  %v360 = vsel %vm238, %v328, 0.0
  %361 = vadd.xlane.f32.xlu0 %v360
  %v362 = vpop.xlane.xlu0 %361
  %v363 = vsel %vm238, %v329, 0.0
  %364 = vadd.xlane.f32.xlu0 %v363
  %v365 = vpop.xlane.xlu0 %364
  %v366 = vsel %vm238, %v330, 0.0
  %367 = vadd.xlane.f32.xlu0 %v366
  %v368 = vpop.xlane.xlu0 %367
  %v369 = vsel %vm238, %v331, 0.0
  %370 = vadd.xlane.f32.xlu0 %v369
  %v371 = vpop.xlane.xlu0 %370
  %v372 = vsel %vm238, %v332, 0.0
  %373 = vadd.xlane.f32.xlu0 %v372
  %v374 = vpop.xlane.xlu0 %373
  %v375 = vsel %vm238, %v333, 0.0
  %376 = vadd.xlane.f32.xlu0 %v375
  %v377 = vpop.xlane.xlu0 %376
  %v378 = vsel %vm238, %v334, 0.0
  %379 = vadd.xlane.f32.xlu0 %v378
  %v380 = vpop.xlane.xlu0 %379
  %v381 = vsel %vm238, %v335, 0.0
  %382 = vadd.xlane.f32.xlu0 %v381
  %v383 = vpop.xlane.xlu0 %382
  %v384 = vmul.f32 %v338, %v287
  %v385 = vmul.f32 %v341, %v287
  %v386 = vmul.f32 %v344, %v287
  %v387 = vmul.f32 %v347, %v287
  %v388 = vmul.f32 %v350, %v287
  %v389 = vmul.f32 %v353, %v287
  %v390 = vmul.f32 %v356, %v287
  %v391 = vmul.f32 %v359, %v287
  %v392 = vmul.f32 %v362, %v287
  %v393 = vmul.f32 %v365, %v287
  %v394 = vmul.f32 %v368, %v287
  %v395 = vmul.f32 %v371, %v287
  %v396 = vmul.f32 %v374, %v287
  %v397 = vmul.f32 %v377, %v287
  %v398 = vmul.f32 %v380, %v287
  %v399 = vmul.f32 %v383, %v287
  %v400 = vadd.f32 %v384, 1e-05
  %v401 = vadd.f32 %v385, 1e-05
  %v402 = vadd.f32 %v386, 1e-05
  %v403 = vadd.f32 %v387, 1e-05
  %v404 = vadd.f32 %v388, 1e-05
  %v405 = vadd.f32 %v389, 1e-05
  %v406 = vadd.f32 %v390, 1e-05
  %v407 = vadd.f32 %v391, 1e-05
  %v408 = vadd.f32 %v392, 1e-05
  %v409 = vadd.f32 %v393, 1e-05
  %v410 = vadd.f32 %v394, 1e-05
  %v411 = vadd.f32 %v395, 1e-05
  %v412 = vadd.f32 %v396, 1e-05
  %v413 = vadd.f32 %v397, 1e-05
  %v414 = vadd.f32 %v398, 1e-05
  %v415 = vadd.f32 %v399, 1e-05
  %v416 = vrsqrt.pop %v400
  %v417 = vrsqrt.pop %v401
  %v418 = vrsqrt.pop %v402
  %v419 = vrsqrt.pop %v403
  %v420 = vrsqrt.pop %v404
  %v421 = vrsqrt.pop %v405
  %v422 = vrsqrt.pop %v406
  %v423 = vrsqrt.pop %v407
  %v424 = vrsqrt.pop %v408
  %v425 = vrsqrt.pop %v409
  %v426 = vrsqrt.pop %v410
  %v427 = vrsqrt.pop %v411
  %v428 = vrsqrt.pop %v412
  %v429 = vrsqrt.pop %v413
  %v430 = vrsqrt.pop %v414
  %v431 = vrsqrt.pop %v415
  %v432 = vmul.f32 %v304, %v416
  %v433 = vmul.f32 %v305, %v417
  %v434 = vmul.f32 %v306, %v418
  %v435 = vmul.f32 %v307, %v419
  %v436 = vmul.f32 %v308, %v420
  %v437 = vmul.f32 %v309, %v421
  %v438 = vmul.f32 %v310, %v422
  %v439 = vmul.f32 %v311, %v423
  %v440 = vmul.f32 %v312, %v424
  %v441 = vmul.f32 %v313, %v425
  %v442 = vmul.f32 %v314, %v426
  %v443 = vmul.f32 %v315, %v427
  %v444 = vmul.f32 %v316, %v428
  %v445 = vmul.f32 %v317, %v429
  %v446 = vmul.f32 %v318, %v430
  %v447 = vmul.f32 %v319, %v431
  %v448 = vlaneseq
  %v449 = vshrl.u32 %v448, 7
  %v450 = vsub.s32 1, %v449
  %v451 = vrot.slane %v35, %v450
  %v452 = vmul.f32 %v432, %v451
  %v453 = vmul.f32 %v433, %v451
  %v454 = vmul.f32 %v434, %v451
  %v455 = vmul.f32 %v435, %v451
  %v456 = vmul.f32 %v436, %v451
  %v457 = vmul.f32 %v437, %v451
  %v458 = vmul.f32 %v438, %v451
  %v459 = vmul.f32 %v439, %v451
  %v460 = vmul.f32 %v440, %v451
  %v461 = vmul.f32 %v441, %v451
  %v462 = vmul.f32 %v442, %v451
  %v463 = vmul.f32 %v443, %v451
  %v464 = vmul.f32 %v444, %v451
  %v465 = vmul.f32 %v445, %v451
  %v466 = vmul.f32 %v446, %v451
  %v467 = vmul.f32 %v447, %v451
  %v468 = vlaneseq
  %v469 = vshrl.u32 %v468, 7
  %v470 = vsub.s32 2, %v469
  %v471 = vrot.slane %v35, %v470
  %v472 = vadd.f32 %v452, %v471
  %v473 = vadd.f32 %v453, %v471
  %v474 = vadd.f32 %v454, %v471
  %v475 = vadd.f32 %v455, %v471
  %v476 = vadd.f32 %v456, %v471
  %v477 = vadd.f32 %v457, %v471
  %v478 = vadd.f32 %v458, %v471
  %v479 = vadd.f32 %v459, %v471
  %v480 = vadd.f32 %v460, %v471
  %v481 = vadd.f32 %v461, %v471
  %v482 = vadd.f32 %v462, %v471
  %v483 = vadd.f32 %v463, %v471
  %v484 = vadd.f32 %v464, %v471
  %v485 = vadd.f32 %v465, %v471
  %v486 = vadd.f32 %v466, %v471
  %v487 = vadd.f32 %v467, %v471
  %488 = vst.msk [vmem:[%s3] sm:$0xff] %vm238, %v472
  %489 = vst.msk [vmem:[%s3 + $0x8] sm:$0xff] %vm238, %v473
  %490 = vst.msk [vmem:[%s3 + $0x10] sm:$0xff] %vm238, %v474
  %491 = vst.msk [vmem:[%s3 + $0x18] sm:$0xff] %vm238, %v475
  %492 = vst.msk [vmem:[%s3 + $0x20] sm:$0xff] %vm238, %v476
  %493 = vst.msk [vmem:[%s3 + $0x28] sm:$0xff] %vm238, %v477
  %494 = vst.msk [vmem:[%s3 + $0x30] sm:$0xff] %vm238, %v478
  %495 = vst.msk [vmem:[%s3 + $0x38] sm:$0xff] %vm238, %v479
  %496 = vst.msk [vmem:[%s3 + $0x40] sm:$0xff] %vm238, %v480
  %497 = vst.msk [vmem:[%s3 + $0x48] sm:$0xff] %vm238, %v481
  %498 = vst.msk [vmem:[%s3 + $0x50] sm:$0xff] %vm238, %v482
  %499 = vst.msk [vmem:[%s3 + $0x58] sm:$0xff] %vm238, %v483
  %500 = vst.msk [vmem:[%s3 + $0x60] sm:$0xff] %vm238, %v484
  %501 = vst.msk [vmem:[%s3 + $0x68] sm:$0xff] %vm238, %v485
  %502 = vst.msk [vmem:[%s3 + $0x70] sm:$0xff] %vm238, %v486
  %503 = vst.msk [vmem:[%s3 + $0x78] sm:$0xff] %vm238, %v487
  // Predicated region
  $region14: #{tpu_custom_call.1} parent=0 // pred_check
    _
  $region15: #{tpu_custom_call.1} parent=0 // pred_check_branch
    %505 = sbr.rel (0) target = $region17
  $region16: #{tpu_custom_call.1} parent=0 // pred_region
    _
  $region17: #{tpu_custom_call.1} parent=0 // pred_fallthru
    _
  // Predicated region
  $region18: #{tpu_custom_call.1} parent=0 // pred_check
    _
  $region19: #{tpu_custom_call.1} parent=0 // pred_check_branch
    %507 = sbr.rel (0) target = $region21
  $region20: #{tpu_custom_call.1} parent=0 // pred_region
    _
  $region21: #{tpu_custom_call.1} parent=0 // pred_fallthru
    _

</llo_original>
